<compile_context>
chip_gen: v7x
topology: tpu7x:2x2x1
jax: 0.10.0
libtpu: 0.0.40
codegen_flags: <defaults>
</compile_context>

<pallas_src>
import jax
import jax.numpy as jnp
from jax import lax
from jax.experimental import pallas as pl
from jax.experimental.pallas import tpu as pltpu


def cam_kernel(gamma_ref, x_ref, o_ref, s_acc, attn_ref, *cache):
    # `cache` holds the optional VMEM-resident (C, n_pad) x slab.
    resident = len(cache) == 1
    x_cache = cache[0] if resident else None

    p = pl.program_id(1)          # phase: 0 = gram accumulation, 1 = attn @ x
    n = pl.program_id(2)          # spatial chunk index
    nt = x_ref.shape[-1]          # static chunk width (multiple of 128)

    @pl.when((p == 0) & (n == 0))
    def _init():
        s_acc[...] = jnp.zeros_like(s_acc)

    @pl.when(p == 0)
    def _gram():
        x = x_ref[0]                          # (C, nt) f32 chunk (zero-padded)
        if resident:
            start = pl.multiple_of(n * nt, 128)
            x_cache[:, pl.ds(start, nt)] = x  # stash for phase 1 (no 2nd HBM read)
        xb = x.astype(jnp.bfloat16)           # bf16 MXU operands, f32 accumulation
        # s += x_chunk @ x_chunk^T (contract over the lane/N axis).
        s_acc[...] += lax.dot_general(
            xb, xb,
            dimension_numbers=(((1,), (1,)), ((), ())),
            preferred_element_type=jnp.float32)

    @pl.when((p == 1) & (n == 0))
    def _softmax():
        # softmax(rowmax(s) - s) == softmax(-s); the stable form needs only
        # one row reduction: exponents of exp(rowmin(s) - s) are all <= 0.
        s = s_acc[...]
        row_min = jnp.min(s, axis=-1, keepdims=True)
        e = jnp.exp(row_min - s)
        inv = pl.reciprocal(jnp.sum(e, axis=-1, keepdims=True), approx=True)
        attn_ref[...] = (e * inv).astype(jnp.bfloat16)

    @pl.when(p == 1)
    def _apply():
        if resident:
            start = pl.multiple_of(n * nt, 128)
            x = x_cache[:, pl.ds(start, nt)]
        else:
            x = x_ref[0]
        res = jnp.dot(attn_ref[...], x.astype(jnp.bfloat16),
                      preferred_element_type=jnp.float32)
        o_ref[0] = (res * gamma_ref[0, 0] + x).astype(o_ref.dtype)


def _vmem_capacity_bytes():
    try:
        cap = getattr(pltpu.get_tpu_info(), "vmem_capacity_bytes", None)
        if cap:
            return int(cap)
    except Exception:
        pass
    return 64 * 1024 * 1024   # conservative (v7x-sized) fallback


def cam_forward(x, gamma, *, n_tile=2048, cache_x=True):
    """CAM forward: out = gamma * (softmax(rowmax(x@x^T) - x@x^T) @ x) + x.

    x: (B, C, H, W) float32, gamma: scalar parameter (shape (1,) or ()).
    cache_x=False forces the two-HBM-pass fallback (for testing).
    """
    B, C, H, W = x.shape
    N = H * W
    itemsize = jnp.dtype(x.dtype).itemsize

    n128 = pl.cdiv(N, 128) * 128          # lane-dense spatial extent
    k128 = n128 // 128

    # Per-generation VMEM budget: ~3/4 of physical capacity
    # (~48 MiB on v7x's 64 MiB, ~96 MiB on v5e/v6e's 128 MiB).
    vmem_cap = _vmem_capacity_bytes()
    budget = (vmem_cap * 3) // 4
    base_scratch = C * C * (4 + 2)        # f32 gram + bf16 attn
    per_nt = 4 * C * itemsize             # double-buffered input + output chunk

    target_nt = max(128, (min(int(n_tile), n128) // 128) * 128)

    def tiling_for(nt_target):
        # Exact-division tiling: num_chunks * nt == n_pad with
        # n_pad - n128 < 128 * num_chunks, instead of rounding N up to a
        # multiple of nt (which could waste up to nt-128 zero columns).
        nt_target = max(128, nt_target)
        num_chunks = pl.cdiv(n128, nt_target)
        nt = pl.cdiv(k128, num_chunks) * 128
        return nt, num_chunks, num_chunks * nt

    # Largest tile the chip can hold without a resident-x cache (x streamed
    # from HBM twice: once for the gram, once for attn @ x).
    fit_nores = max(128, ((budget - base_scratch) // per_nt // 128) * 128)
    nt_size, num_chunks, n_pad = tiling_for(min(target_nt, fit_nores))
    resident = False

    # If x needs more than one chunk, try to keep the whole (C, n_pad) slab
    # resident in VMEM so phase 1 never re-reads HBM: HBM traffic drops from
    # (2 reads + 1 write) to (1 read + 1 write) of C*N*4 bytes.
    if cache_x and num_chunks > 1:
        fit_res = ((budget - base_scratch - C * n128 * itemsize)
                   // per_nt // 128) * 128
        if fit_res >= 128:
            nt_r, chunks_r, npad_r = tiling_for(min(target_nt, fit_res))
            if base_scratch + C * npad_r * itemsize + per_nt * nt_r <= budget:
                resident = True
                nt_size, num_chunks, n_pad = nt_r, chunks_r, npad_r

    x_flat = x.reshape(B, C, N)
    if n_pad != N:
        x_flat = jnp.pad(x_flat, ((0, 0), (0, 0), (0, n_pad - N)))
    gamma_smem = jnp.asarray(gamma, jnp.float32).reshape(1, 1)

    scratch = [pltpu.VMEM((C, C), jnp.float32),    # gram accumulator
               pltpu.VMEM((C, C), jnp.bfloat16)]   # softmaxed attention
    if resident:
        scratch.append(pltpu.VMEM((C, n_pad), x.dtype))   # resident x slab

    if resident:
        # Phase 0 streams chunk n; phase 1 parks the x window on the last
        # chunk (index unchanged across n -> no re-DMA) and reads the slab.
        x_index = lambda b, p, n: (b, 0, n * (1 - p) + p * (num_chunks - 1))
    else:
        x_index = lambda b, p, n: (b, 0, n)

    # VMEM limit sized from the real footprint (buffers + scratch) + headroom,
    # capped at physical capacity. No artificial 48 MiB clamp.
    footprint = (per_nt * nt_size + base_scratch
                 + (C * n_pad * itemsize if resident else 0))
    vmem_limit = min(vmem_cap,
                     max(32 * 1024 * 1024, footprint + footprint // 4 + (1 << 20)))

    out_flat = pl.pallas_call(
        cam_kernel,
        out_shape=jax.ShapeDtypeStruct((B, C, n_pad), x.dtype),
        grid_spec=pltpu.PrefetchScalarGridSpec(
            num_scalar_prefetch=0,
            grid=(B, 2, num_chunks),
            in_specs=[
                pl.BlockSpec(memory_space=pltpu.MemorySpace.SMEM),     # gamma
                pl.BlockSpec((1, C, nt_size), x_index),                # x chunks
            ],
            # Parked-output trick: during phase 0 the output window stays on
            # chunk 0 and is never written; it is only flushed when its block
            # index changes, which first happens AFTER phase 1 / n == 0 has
            # fully written it. Phase 1 then writes each chunk exactly once,
            # in order, with full-lane (nt multiple of 128) stores.
            out_specs=pl.BlockSpec((1, C, nt_size),
                                   lambda b, p, n: (b, 0, p * n)),
            scratch_shapes=scratch,
        ),
        compiler_params=pltpu.CompilerParams(
            dimension_semantics=("parallel", "arbitrary", "arbitrary"),
            vmem_limit_bytes=int(vmem_limit)),
    )(gamma_smem, x_flat)

    return out_flat[:, :, :N].reshape(B, C, H, W)


def cam_reference(x, gamma):
    """Pure-JAX f32 reference matching the PyTorch module."""
    B, C, H, W = x.shape
    q = x.reshape(B, C, H * W)
    s = jnp.einsum('bcn,bdn->bcd', q, q)
    qk = jnp.max(s, axis=-1, keepdims=True) - s
    attn = jax.nn.softmax(qk, axis=-1)
    res = jnp.einsum('bcd,bdn->bcn', attn, q).reshape(B, C, H, W)
    return res * jnp.reshape(gamma, ()) + x


def cam_reference_bf16(x, gamma):
    """Precision-matched reference (bf16 MXU operands, f32 accumulation)."""
    B, C, H, W = x.shape
    qb = x.reshape(B, C, H * W).astype(jnp.bfloat16)
    s = jnp.einsum('bcn,bdn->bcd', qb, qb, preferred_element_type=jnp.float32)
    qk = jnp.max(s, axis=-1, keepdims=True) - s
    attn = jax.nn.softmax(qk, axis=-1)
    res = jnp.einsum('bcd,bdn->bcn', attn.astype(jnp.bfloat16), qb,
                     preferred_element_type=jnp.float32).reshape(B, C, H, W)
    return res * jnp.reshape(gamma, ()) + x


if __name__ == "__main__":
    key = jax.random.PRNGKey(0)
    k1, k2 = jax.random.split(key)

    # --- config A: module-default gamma (zeros init) -> out == x exactly ---
    B, C, H, W = 2, 4, 16, 16
    x = jax.random.normal(k1, (B, C, H, W), dtype=jnp.float32)
    gamma0 = jnp.zeros((1,), dtype=jnp.float32)   # nn.Parameter(torch.zeros(1))

    # n_tile=128 -> 2 chunks -> exercises the resident-x (single HBM pass) path.
    out = jax.block_until_ready(cam_forward(x, gamma0, n_tile=128))
    ref = cam_reference(x, gamma0)
    assert out.shape == (B, C, H, W)
    assert jnp.allclose(out, ref, atol=1e-6, rtol=1e-6), "mismatch (gamma=0)"

    # --- config A, non-zero gamma: attention path vs bf16-matched reference ---
    gamma1 = jnp.full((1,), 0.5, dtype=jnp.float32)
    out1 = jax.block_until_ready(cam_forward(x, gamma1, n_tile=128))
    ref1 = cam_reference_bf16(x, gamma1)
    assert jnp.allclose(out1, ref1, atol=5e-2, rtol=5e-2), "mismatch (gamma=0.5)"

    # --- config A, forced two-HBM-pass fallback (cache_x=False) -------------
    out1b = jax.block_until_ready(cam_forward(x, gamma1, n_tile=128,
                                              cache_x=False))
    assert jnp.allclose(out1b, ref1, atol=5e-2, rtol=5e-2), "mismatch (two-pass)"

    # --- config B: spatial size not a multiple of 128 (N padded), 1 chunk ---
    B2, C2, H2, W2 = 1, 8, 10, 10
    x2 = jax.random.normal(k2, (B2, C2, H2, W2), dtype=jnp.float32)
    gamma2 = jnp.full((1,), 0.3, dtype=jnp.float32)
    out2 = jax.block_until_ready(cam_forward(x2, gamma2))
    ref2 = cam_reference_bf16(x2, gamma2)
    assert out2.shape == (B2, C2, H2, W2)
    assert jnp.allclose(out2, ref2, atol=5e-2, rtol=5e-2), "mismatch (padded N)"

    print("KERNEL_OK")
</pallas_src>

<mosaic_0001>
module attributes {stable_mosaic.version = 11 : i64} {
  func.func @cam_kernel(%arg0: i32, %arg1: i32, %arg2: i32, %arg3: memref<1x1xf32, #tpu.memory_space<smem>>, %arg4: memref<1x4x128xf32, #tpu.memory_space<vmem>>, %arg5: memref<1x4x128xf32, #tpu.memory_space<vmem>>, %arg6: memref<4x4xf32, #tpu.memory_space<vmem>>, %arg7: memref<4x4xbf16, #tpu.memory_space<vmem>>, %arg8: memref<4x256xf32, #tpu.memory_space<vmem>>) attributes {dimension_semantics = [#tpu.dimension_semantics<parallel>, #tpu.dimension_semantics<arbitrary>, #tpu.dimension_semantics<arbitrary>], iteration_bounds = array<i64: 2, 2, 2>, scalar_prefetch = 0 : i64, scratch_operands = 3 : i64, tpu.core_type = #tpu.core_type<tc>, window_params = [{transform_indices = @transform_0, window_bounds = array<i64: 1, 1>}, {transform_indices = @transform_1, window_bounds = array<i64: 1, 4, 128>}, {transform_indices = @transform_2, window_bounds = array<i64: 1, 4, 128>}]} {
    %c0_i32 = arith.constant 0 : i32
    %0 = arith.cmpi eq, %arg1, %c0_i32 : i32
    %c0_i32_0 = arith.constant 0 : i32
    %1 = arith.cmpi eq, %arg2, %c0_i32_0 : i32
    %2 = arith.andi %0, %1 : i1
    %3 = arith.extui %2 : i1 to i32
    %c0_i32_1 = arith.constant 0 : i32
    %4 = arith.cmpi ne, %3, %c0_i32_1 : i32
    scf.if %4 {
      %cst = arith.constant 0.000000e+00 : f32
      %16 = vector.broadcast %cst : f32 to vector<4x4xf32>
      %c0 = arith.constant 0 : index
      %c0_8 = arith.constant 0 : index
      %17 = vector.load %arg6[%c0, %c0_8] : memref<4x4xf32, #tpu.memory_space<vmem>>, vector<4x4xf32>
      tpu.vector_store %arg6[%c0, %c0_8], %16 {strides = array<i32>} : memref<4x4xf32, #tpu.memory_space<vmem>>, vector<4x4xf32>,
    } else {
    }
    %c0_i32_2 = arith.constant 0 : i32
    %5 = arith.cmpi eq, %arg1, %c0_i32_2 : i32
    %6 = arith.extui %5 : i1 to i32
    %c0_i32_3 = arith.constant 0 : i32
    %7 = arith.cmpi ne, %6, %c0_i32_3 : i32
    scf.if %7 {
      %c0 = arith.constant 0 : index
      %c0_8 = arith.constant 0 : index
      %c0_9 = arith.constant 0 : index
      %16 = vector.load %arg4[%c0, %c0_8, %c0_9] : memref<1x4x128xf32, #tpu.memory_space<vmem>>, vector<1x4x128xf32>
      %17 = vector.shape_cast %16 : vector<1x4x128xf32> to vector<4x128xf32>
      %c128_i32 = arith.constant 128 : i32
      %18 = arith.muli %arg2, %c128_i32 : i32
      %19 = tpu.assume_multiple %18, 128 : i32
      %c0_10 = arith.constant 0 : index
      %20 = arith.index_cast %19 : i32 to index
      %21 = vector.load %arg8[%c0_10, %20] : memref<4x256xf32, #tpu.memory_space<vmem>>, vector<4x128xf32>
      tpu.vector_store %arg8[%c0_10, %20], %17 {strides = array<i32>} : memref<4x256xf32, #tpu.memory_space<vmem>>, vector<4x128xf32>,
      %22 = arith.truncf %17 : vector<4x128xf32> to vector<4x128xbf16>
      %c0_11 = arith.constant 0 : index
      %c0_12 = arith.constant 0 : index
      %23 = vector.load %arg6[%c0_11, %c0_12] : memref<4x4xf32, #tpu.memory_space<vmem>>, vector<4x4xf32>
      %cst = arith.constant dense<0.000000e+00> : vector<4x4xf32>
      %24 = tpu.matmul %22, %22, %cst {dimension_numbers = #tpu.dot_dimension_numbers<[1], [1], [0], [0], [0, 0, 1, 0], [], []>} : vector<4x128xbf16>, vector<4x128xbf16>, vector<4x4xf32> -> vector<4x4xf32>
      %25 = arith.addf %23, %24 : vector<4x4xf32>
      %c0_13 = arith.constant 0 : index
      %c0_14 = arith.constant 0 : index
      %26 = vector.load %arg6[%c0_13, %c0_14] : memref<4x4xf32, #tpu.memory_space<vmem>>, vector<4x4xf32>
      tpu.vector_store %arg6[%c0_13, %c0_14], %25 {strides = array<i32>} : memref<4x4xf32, #tpu.memory_space<vmem>>, vector<4x4xf32>,
    } else {
    }
    %c1_i32 = arith.constant 1 : i32
    %8 = arith.cmpi eq, %arg1, %c1_i32 : i32
    %c0_i32_4 = arith.constant 0 : i32
    %9 = arith.cmpi eq, %arg2, %c0_i32_4 : i32
    %10 = arith.andi %8, %9 : i1
    %11 = arith.extui %10 : i1 to i32
    %c0_i32_5 = arith.constant 0 : i32
    %12 = arith.cmpi ne, %11, %c0_i32_5 : i32
    scf.if %12 {
      %c0 = arith.constant 0 : index
      %c0_8 = arith.constant 0 : index
      %16 = vector.load %arg6[%c0, %c0_8] : memref<4x4xf32, #tpu.memory_space<vmem>>, vector<4x4xf32>
      %cst = arith.constant dense<0x7F800000> : vector<4xf32>
      %17 = vector.multi_reduction <minimumf>, %16, %cst [1] : vector<4x4xf32> to vector<4xf32>
      %18 = vector.shape_cast %17 : vector<4xf32> to vector<4x1xf32>
      %19 = vector.broadcast %18 : vector<4x1xf32> to vector<4x4xf32>
      %20 = arith.subf %19, %16 : vector<4x4xf32>
      %21 = math.exp %20 : vector<4x4xf32>
      %cst_9 = arith.constant dense<0.000000e+00> : vector<4xf32>
      %22 = vector.multi_reduction <add>, %21, %cst_9 [1] : vector<4x4xf32> to vector<4xf32>
      %23 = vector.shape_cast %22 : vector<4xf32> to vector<4x1xf32>
      %24 = tpu.reciprocal %23 {approx = true} : vector<4x1xf32> -> vector<4x1xf32>
      %25 = vector.broadcast %24 : vector<4x1xf32> to vector<4x4xf32>
      %26 = arith.mulf %21, %25 : vector<4x4xf32>
      %27 = arith.truncf %26 : vector<4x4xf32> to vector<4x4xbf16>
      %c0_10 = arith.constant 0 : index
      %c0_11 = arith.constant 0 : index
      %28 = vector.load %arg7[%c0_10, %c0_11] : memref<4x4xbf16, #tpu.memory_space<vmem>>, vector<4x4xbf16>
      tpu.vector_store %arg7[%c0_10, %c0_11], %27 {strides = array<i32>} : memref<4x4xbf16, #tpu.memory_space<vmem>>, vector<4x4xbf16>,
    } else {
    }
    %c1_i32_6 = arith.constant 1 : i32
    %13 = arith.cmpi eq, %arg1, %c1_i32_6 : i32
    %14 = arith.extui %13 : i1 to i32
    %c0_i32_7 = arith.constant 0 : i32
    %15 = arith.cmpi ne, %14, %c0_i32_7 : i32
    scf.if %15 {
      %c128_i32 = arith.constant 128 : i32
      %16 = arith.muli %arg2, %c128_i32 : i32
      %17 = tpu.assume_multiple %16, 128 : i32
      %c0 = arith.constant 0 : index
      %18 = arith.index_cast %17 : i32 to index
      %19 = vector.load %arg8[%c0, %18] : memref<4x256xf32, #tpu.memory_space<vmem>>, vector<4x128xf32>
      %c0_8 = arith.constant 0 : index
      %c0_9 = arith.constant 0 : index
      %20 = vector.load %arg7[%c0_8, %c0_9] : memref<4x4xbf16, #tpu.memory_space<vmem>>, vector<4x4xbf16>
      %21 = arith.truncf %19 : vector<4x128xf32> to vector<4x128xbf16>
      %cst = arith.constant dense<0.000000e+00> : vector<4x128xf32>
      %22 = tpu.matmul %20, %21, %cst {dimension_numbers = #tpu.dot_dimension_numbers<[1], [0], [0], [1], [0, 0, 1, 1], [], []>} : vector<4x4xbf16>, vector<4x128xbf16>, vector<4x128xf32> -> vector<4x128xf32>
      %c0_10 = arith.constant 0 : index
      %c0_11 = arith.constant 0 : index
      %23 = memref.load %arg3[%c0_10, %c0_11] : memref<1x1xf32, #tpu.memory_space<smem>>
      %24 = vector.broadcast %23 : f32 to vector<4x128xf32>
      %25 = arith.mulf %22, %24 : vector<4x128xf32>
      %26 = arith.addf %25, %19 : vector<4x128xf32>
      %c0_12 = arith.constant 0 : index
      %c0_13 = arith.constant 0 : index
      %c0_14 = arith.constant 0 : index
      %27 = vector.load %arg5[%c0_12, %c0_13, %c0_14] : memref<1x4x128xf32, #tpu.memory_space<vmem>>, vector<1x4x128xf32>
      %28 = vector.shape_cast %27 : vector<1x4x128xf32> to vector<4x128xf32>
      %29 = vector.shape_cast %26 : vector<4x128xf32> to vector<1x4x128xf32>
      tpu.vector_store %arg5[%c0_12, %c0_13, %c0_14], %29 {strides = array<i32>} : memref<1x4x128xf32, #tpu.memory_space<vmem>>, vector<1x4x128xf32>,
    } else {
    }
    return
  }
  func.func @transform_0(%arg0: i32, %arg1: i32, %arg2: i32) -> (i32, i32) {
    %c0_i32 = arith.constant 0 : i32
    %c0_i32_0 = arith.constant 0 : i32
    %c0_i32_1 = arith.constant 0 : i32
    return %c0_i32, %c0_i32_0 : i32, i32
  }
  func.func @transform_1(%arg0: i32, %arg1: i32, %arg2: i32) -> (i32, i32, i32) {
    %c1_i32 = arith.constant 1 : i32
    %0 = arith.subi %c1_i32, %arg1 : i32
    %1 = arith.muli %arg2, %0 : i32
    %c1_i32_0 = arith.constant 1 : i32
    %2 = arith.muli %arg1, %c1_i32_0 : i32
    %3 = arith.addi %1, %2 : i32
    %c0_i32 = arith.constant 0 : i32
    %c0_i32_1 = arith.constant 0 : i32
    return %arg0, %c0_i32, %3 : i32, i32, i32
  }
  func.func @transform_2(%arg0: i32, %arg1: i32, %arg2: i32) -> (i32, i32, i32) {
    %0 = arith.muli %arg1, %arg2 : i32
    %c0_i32 = arith.constant 0 : i32
    %c0_i32_0 = arith.constant 0 : i32
    return %arg0, %c0_i32, %0 : i32, i32, i32
  }
}

</mosaic_0001>

<llo_original>
// kernel: tpu_custom_call.1
$region0: #{tpu_custom_call.1}
  #allocation0 [shape = 'u32[]', space=smem, size = 0x4, offset = 0x4, fixed_abs, tag = 'smem constant byte address 0x4 - core index']
  #allocation1 [shape = 'u32[144,128]{1,0:T(1,128)}', space=vmem, size = 0x12000, scoped, tag = 'internal scratch']
  #allocation2 [shape = 'f32[4,4]{1,0:T(4,128)}', space=vmem, size = 0x800, scoped, tag = 'scratch operand']
  #allocation3 [shape = 'bf16[4,4]{1,0:T(4,128)(2,1)}', space=vmem, size = 0x400, scoped, tag = 'scratch operand']
  #allocation4 [shape = 'f32[4,256]{1,0:T(4,128)}', space=vmem, size = 0x1000, scoped, tag = 'scratch operand']
  #allocation5 [shape = 'f32[1,1]{1,0:T(1,128)S(6)}', space=smem, size = 0x200, scoped, tag = 'scoped memory for tpu_custom_call.1']
  %s0 = inlined_call_operand.<no memory space> [shape: f32[1,1], index: 0, kind: input, shape index: {}]
  %s1 = inlined_call_operand.hbm [shape: f32[2,4,256], index: 1, kind: input, shape index: {}]
  %s2 = inlined_call_operand.hbm [shape: f32[2,4,256], index: 2, kind: output, shape index: {}]
  %s3 = sld [smem:[#allocation0]]
  $region61: #{tpu_custom_call.1} parent=0
    _
  %s5 = ssub.s32 1, %s3
  %s6 = scalar_select 0, %s5, %s3
  %7 = sst [smem:[#allocation5]] %s0
  $region1: #{tpu_custom_call.1} parent=0
    #allocation6 [shape = 'u8[4096]{0}', space=vmem, size = 0x1000, scoped, tag = 'input window, operand 1']
    #allocation7 [shape = 's32[2]{0}', space=sflag, size = 0x8, scoped, tag = 'scoped memory for tpu_custom_call.1']
    #allocation8 [shape = 's32[2]{0}', space=sflag, size = 0x8, scoped, tag = 'scoped memory for tpu_custom_call.1']
    #allocation9 [shape = 'u8[4096]{0}', space=vmem, size = 0x1000, scoped, tag = 'output window, operand 0']
    %8 = vsyncpa [#allocation7], 0
    %s9 = scalar_lea.sflag [#allocation7], 1
    %10 = vsyncpa %s9, 0
    %11 = vsyncpa [#allocation8], 0
    %s12 = scalar_lea.sflag [#allocation8], 1
    %13 = vsyncpa %s12, 0
    loop: start=0, step=1, limit=10
    $region2: #{tpu_custom_call.1} parent=1 // loop_pre_header
      _
    $region3: #{tpu_custom_call.1} parent=1 // loop_header
      %s15 = sphi 0, %s19
      %p16 = scmp.ge.s32.totalorder %s15, 10
      %s22 = sphi 0, %s41
      %s23 = sphi 0, %s37
      %s24 = sphi 0, %s33
      %s25 = sphi 0, %s22
      %s26 = sphi 0, %s23
      %s27 = sphi 0, %s24
      %s28 = sphi 0, %s25
      %s29 = sphi 0, %s26
      %s30 = sphi 0, %s27
      %s42 = sphi 0, %s42
      %s44 = sphi 0, %s42
      %s45 = sphi 0, %s44
      %s59 = sphi 0, %s45
      %s73 = sphi 0, %s75
      %s76 = sphi 0, %s73
      %s77 = sphi 0, %s76
      %s93 = sphi 0, %s77
      %s103 = sphi 0, %s105
      %s106 = sphi 0, %s103
      %s107 = sphi 0, %s106
      %s123 = sphi 0, %s107
    $region4: #{tpu_custom_call.1} parent=1 // loop_header_branch
      %18 = sbr.rel (%p16) target = $region8
    $region5: #{tpu_custom_call.1} parent=1 // loop_body
      %s20 = ssub.s32 %s15, 1
      %s21 = ssub.s32 %s15, 2
      %s31 = sadd.s32 1, %s24
      %p32 = scmp.ge.s32.totalorder %s31, 2
      %s33 = scalar_select %p32, 0, %s31
      %s34 = sadd.s32 1, %s23
      %s35 = scalar_select %p32, %s34, %s23
      %p36 = scmp.ge.s32.totalorder %s35, 2
      %s37 = scalar_select %p36, 0, %s35
      %s38 = sadd.s32 1, %s22
      %s39 = scalar_select %p36, %s38, %s22
      %p40 = scmp.ge.s32.totalorder %s39, 2
      %s41 = scalar_select %p40, 0, %s39
      %s43 = sadd.s32 %s42, 1
      %p46 = scmp.eq.s32.totalorder %s15, 7
      %p47 = scmp.ne.s32.totalorder %s42, %s44
      %p48 = scmp.eq.s32.totalorder %s15, 0
      %p49 = por %p47, %p48
      %p50 = scmp.ne.s32.totalorder %s42, %s44
      %p51 = scmp.eq.s32.totalorder %s20, 7
      %p52 = por %p50, %p51
      %p53 = scmp.ne.s32.totalorder %s44, %s45
      %p54 = scmp.eq.s32.totalorder %s20, 0
      %p55 = por %p53, %p54
      %p56 = scmp.ne.s32.totalorder %s44, %s45
      %p57 = scmp.eq.s32.totalorder %s21, 7
      %p58 = por %p56, %p57
      %p60 = scmp.ne.s32.totalorder %s45, %s59
      %p61 = scmp.eq.s32.totalorder %s21, 0
      %p62 = por %p60, %p61
      %s63 = ssub.s32 1, %s23
      %s64 = smul.u32 %s24, %s63
      %s65 = sadd.s32 %s64, %s23
      %s66 = ssub.s32 1, %s37
      %s67 = smul.u32 %s33, %s66
      %s68 = sadd.s32 %s67, %s37
      %s69 = ssub.s32 %s22, %s41
      %s70 = ssub.s32 %s65, %s68
      %s71 = sor.u32 %s69, %s70
      %p72 = scmp.eq.s32.totalorder %s71, 0
      %s74 = sadd.s32 %s73, 1
      %s75 = scalar_select %p72, %s73, %s74
      %p78 = pneg %p72
      %p79 = scmp.eq.s32.totalorder %s15, 7
      %p80 = por %p78, %p79
      %p81 = scmp.ne.s32.totalorder %s73, %s76
      %p82 = scmp.eq.s32.totalorder %s15, 0
      %p83 = por %p81, %p82
      %p84 = scmp.ne.s32.totalorder %s73, %s76
      %p85 = scmp.eq.s32.totalorder %s20, 7
      %p86 = por %p84, %p85
      %p87 = scmp.ne.s32.totalorder %s76, %s77
      %p88 = scmp.eq.s32.totalorder %s20, 0
      %p89 = por %p87, %p88
      %p90 = scmp.ne.s32.totalorder %s76, %s77
      %p91 = scmp.eq.s32.totalorder %s21, 7
      %p92 = por %p90, %p91
      %p94 = scmp.ne.s32.totalorder %s77, %s93
      %p95 = scmp.eq.s32.totalorder %s21, 0
      %p96 = por %p94, %p95
      %s97 = smul.u32 %s23, %s24
      %s98 = smul.u32 %s37, %s33
      %s99 = ssub.s32 %s22, %s41
      %s100 = ssub.s32 %s97, %s98
      %s101 = sor.u32 %s99, %s100
      %p102 = scmp.eq.s32.totalorder %s101, 0
      %s104 = sadd.s32 %s103, 1
      %s105 = scalar_select %p102, %s103, %s104
      %p108 = pneg %p102
      %p109 = scmp.eq.s32.totalorder %s15, 7
      %p110 = por %p108, %p109
      %p111 = scmp.ne.s32.totalorder %s103, %s106
      %p112 = scmp.eq.s32.totalorder %s15, 0
      %p113 = por %p111, %p112
      %p114 = scmp.ne.s32.totalorder %s103, %s106
      %p115 = scmp.eq.s32.totalorder %s20, 7
      %p116 = por %p114, %p115
      %p117 = scmp.ne.s32.totalorder %s106, %s107
      %p118 = scmp.eq.s32.totalorder %s20, 0
      %p119 = por %p117, %p118
      %p120 = scmp.ne.s32.totalorder %s106, %s107
      %p121 = scmp.eq.s32.totalorder %s21, 7
      %p122 = por %p120, %p121
      %p124 = scmp.ne.s32.totalorder %s107, %s123
      %p125 = scmp.eq.s32.totalorder %s21, 0
      %p126 = por %p124, %p125
      %p127 = scmp.le.s32.totalorder 1, %s15
      %p128 = scmp.lt.s32.totalorder %s15, 9
      %p129 = pnand %p127, %p128
      %p130 = pneg %p129
      // Predicated region
      $region9: #{tpu_custom_call.1} parent=5 // pred_check
        _
      $region10: #{tpu_custom_call.1} parent=5 // pred_check_branch
        %132 = sbr.rel (%p129) target = $region12
      $region11: #{tpu_custom_call.1} parent=5 // pred_region
        %s133 = ssub.s32 %s15, 1
        // Predicated region
        $region13: #{tpu_custom_call.1} parent=11 // pred_check
          %p134 = pneg %p55
        $region14: #{tpu_custom_call.1} parent=11 // pred_check_branch
          %136 = sbr.rel (%p134) target = $region16
        $region15: #{tpu_custom_call.1} parent=11 // pred_region
          _
        $region16: #{tpu_custom_call.1} parent=11 // pred_fallthru
          _
      $region12: #{tpu_custom_call.1} parent=5 // pred_fallthru
        _
      %p137 = scmp.lt.s32.totalorder %s15, 8
      // Predicated region
      $region17: #{tpu_custom_call.1} parent=5 // pred_check
        %p138 = pneg %p137
      $region18: #{tpu_custom_call.1} parent=5 // pred_check_branch
        %140 = sbr.rel (%p138) target = $region20
      $region19: #{tpu_custom_call.1} parent=5 // pred_region
        // Predicated region
        $region21: #{tpu_custom_call.1} parent=19 // pred_check
          %p141 = pneg %p83
        $region22: #{tpu_custom_call.1} parent=19 // pred_check_branch
          %143 = sbr.rel (%p141) target = $region24
        $region23: #{tpu_custom_call.1} parent=19 // pred_region
          %s144 = sand.u32 %s73, 1
          %s145 = scalar_lea.sflag [#allocation7], %s144
          %s146 = sand.u32 %s73, 1
          %s147 = smul.addr %s146, 4
          %s148 = scalar_lea.vmem [#allocation6], %s147
          %s149 = ssub.s32 1, %s23
          %s150 = smul.u32 %s24, %s149
          %s151 = sadd.s32 %s150, %s23
          %s153 = ssub.s32 64, 64
          %154 = vsyncadd %s145, %s153
          %s155 = smul.addr %s22, 2
          %s156 = sadd.s32 %s151, %s155
          %s157 = smul.addr %s156, 64
          %s158 = scalar_lea.hbm %s1, %s157
          %s160 = sshll.u32 %s148, 4
          %s161 = int_to_ptr.vmem [resolvable:$true] %s160
          %163 = dma.hbm_to_vmem [thread:$0]  %s158, 64, %s161, %s145
        $region24: #{tpu_custom_call.1} parent=19 // pred_fallthru
          _
      $region20: #{tpu_custom_call.1} parent=5 // pred_fallthru
        _
      %p164 = scmp.le.s32.totalorder 1, %s15
      %p165 = scmp.lt.s32.totalorder %s15, 9
      %p166 = pnand %p164, %p165
      %p167 = pneg %p166
      // Predicated region
      $region25: #{tpu_custom_call.1} parent=5 // pred_check
        _
      $region26: #{tpu_custom_call.1} parent=5 // pred_check_branch
        %169 = sbr.rel (%p166) target = $region28
      $region27: #{tpu_custom_call.1} parent=5 // pred_region
        %s170 = ssub.s32 %s15, 1
        %s171 = sand.u32 %s76, 1
        %s172 = scalar_lea.sflag [#allocation7], %s171
        %s173 = sand.u32 %s76, 1
        %s174 = smul.addr %s173, 4
        %s175 = scalar_lea.vmem [#allocation6], %s174
        // Predicated region
        $region29: #{tpu_custom_call.1} parent=27 // pred_check
          %p176 = pneg %p89
        $region30: #{tpu_custom_call.1} parent=27 // pred_check_branch
          %178 = sbr.rel (%p176) target = $region32
        $region31: #{tpu_custom_call.1} parent=27 // pred_region
          %179 = dma.done %s172, 64
        $region32: #{tpu_custom_call.1} parent=27 // pred_fallthru
          _
        %p180 = pneg %p55
        %p181 = pneg %p52
        %s182 = sand.u32 %s76, 1
        %s183 = scalar_lea.sflag [#allocation7], %s182
        %s184 = sand.u32 %s76, 1
        %s185 = smul.addr %s184, 4
        %s186 = scalar_lea.vmem [#allocation6], %s185
        %p187 = pneg %p89
        %p188 = pneg %p86
        %p189 = pneg %p119
        %p190 = pneg %p116
        %s191 = sand.u32 %s106, 1
        %s192 = scalar_lea.sflag [#allocation8], %s191
        %s193 = sand.u32 %s106, 1
        %s194 = smul.addr %s193, 4
        %s195 = scalar_lea.vmem [#allocation9], %s194
        %s196 = ssub.s32 1, %s26
        %s197 = smul.u32 %s27, %s196
        %s198 = sadd.s32 %s197, %s26
        %s199 = smul.u32 %s26, %s27
        %p201 = scmp.eq.s32.totalorder %s26, 0
        %p202 = scmp.eq.s32.totalorder %s27, 0
        %p203 = pnand %p201, %p202
        %p204 = pneg %p203
        // Predicated region
        $region33: #{tpu_custom_call.1} parent=27 // pred_check
          _
        $region34: #{tpu_custom_call.1} parent=27 // pred_check_branch
          %206 = sbr.rel (%p203) target = $region36
        $region35: #{tpu_custom_call.1} parent=27 // pred_region
          %vm207 = vcmask 27648
          %208 = vst.msk [vmem:[#allocation2] sm:$0xf] %vm207, 0.0
        $region36: #{tpu_custom_call.1} parent=27 // pred_fallthru
          _
        // Predicated region
        $region37: #{tpu_custom_call.1} parent=27 // pred_check
          %p209 = pneg %p201
        $region38: #{tpu_custom_call.1} parent=27 // pred_check_branch
          %211 = sbr.rel (%p209) target = $region40
        $region39: #{tpu_custom_call.1} parent=27 // pred_region
          %v212 = vld [vmem:[%s175] sm:$0xf]
          %s213 = smul.u32 %s27, 128
          %s214 = sshra.s32 %s213, 7
          %s215 = sand.u32 %s213, 127
          %s216 = smul.addr %s214, 4
          %s217 = scalar_lea.vmem [#allocation4], %s216
          %218 = vst [vmem:[%s217] sm:$0xf] %v212
          %v219 = vpack.c.bf16 %v212, %v212
          %v220 = vld [vmem:[#allocation2] sm:$0xf]
          %221 = vmatprep.subr.bf16.mxu0 0
          %222 = vmatpush1.bf16.xpose.msra.mxu0 %v219
          %223 = vmatprep.subr.bf16.mxu0 0
          %224 = vmatpush1.bf16.xpose.msra.mxu0 0
          %225 = vmatprep.subr.bf16.mxu0 0
          %226 = vmatpush1.bf16.xpose.msra.mxu0 0
          %227 = vmatprep.subr.bf16.mxu0 0
          %228 = vmatpush1.bf16.xpose.msra.mxu0 0
          %229 = vmatprep.subr.bf16.mxu0 0
          %230 = vmatpush1.bf16.xpose.msra.mxu0 0
          %231 = vmatprep.subr.bf16.mxu0 0
          %232 = vmatpush1.bf16.xpose.msra.mxu0 0
          %233 = vmatprep.subr.bf16.mxu0 0
          %234 = vmatpush1.bf16.xpose.msra.mxu0 0
          %235 = vmatprep.subr.bf16.mxu0 0
          %236 = vmatpush1.bf16.xpose.msra.mxu0 0
          %237 = vmatprep.subr.bf16.mxu0 0
          %238 = vmatpush1.bf16.xpose.msra.mxu0 0
          %239 = vmatprep.subr.bf16.mxu0 0
          %240 = vmatpush1.bf16.xpose.msra.mxu0 0
          %241 = vmatprep.subr.bf16.mxu0 0
          %242 = vmatpush1.bf16.xpose.msra.mxu0 0
          %243 = vmatprep.subr.bf16.mxu0 0
          %244 = vmatpush1.bf16.xpose.msra.mxu0 0
          %245 = vmatprep.subr.bf16.mxu0 0
          %246 = vmatpush1.bf16.xpose.msra.mxu0 0
          %247 = vmatprep.subr.bf16.mxu0 0
          %248 = vmatpush1.bf16.xpose.msra.mxu0 0
          %249 = vmatprep.subr.bf16.mxu0 0
          %250 = vmatpush1.bf16.xpose.msra.mxu0 0
          %251 = vmatprep.subr.bf16.mxu0 0
          %252 = vmatpush1.bf16.xpose.msra.mxu0 0
          %253 = vmatprep.mubr.bf16.mxu0 0
          %254 = vmatmul.mubr.bf16.gmra.mrb[0].mxu0 %v219
          %v255 = vpop.f32.mrb[0].mxu0
          %v256 = vadd.f32 0.0, %v255
          %v257 = vpop.f32.mrb[0].mxu0
          %v258 = vpop.f32.mrb[0].mxu0
          %v259 = vpop.f32.mrb[0].mxu0
          %260 = vdwg.mxu0
          %v261 = vadd.f32 %v220, %v256
          %vm262 = vcmask 27648
          %263 = vst.msk [vmem:[#allocation2] sm:$0xf] %vm262, %v261
        $region40: #{tpu_custom_call.1} parent=27 // pred_fallthru
          _
        %p264 = scmp.eq.s32.totalorder %s26, 1
        %p265 = pnand %p264, %p202
        %p266 = pneg %p265
        // Predicated region
        $region41: #{tpu_custom_call.1} parent=27 // pred_check
          _
        $region42: #{tpu_custom_call.1} parent=27 // pred_check_branch
          %268 = sbr.rel (%p265) target = $region44
        $region43: #{tpu_custom_call.1} parent=27 // pred_region
          %v269 = vld [vmem:[#allocation2] sm:$0xf]
          %vm270 = vcmask 27648
          %v271 = vsel %vm270, %v269, inf
          %272 = vmin.xlane.f32.xlu0 %v271
          %v273 = vpop.xlane.xlu0 %272
          %v274 = vsub.f32 %v273, %v269
          %v275 = vmul.f32 %v274, 1.442695
          %v276 = vpow.pop %v275
          %v277 = vsel %vm270, %v276, 0.0
          %278 = vadd.xlane.f32.xlu0 %v277
          %v279 = vpop.xlane.xlu0 %278
          %v280 = vrcp.pop %v279
          %v281 = vmul.f32 %v276, %v280
          %v282 = vpack.c.bf16 %v281, %v281
          %vm283 = vcmask 25600
          %284 = vst.msk [vmem:[#allocation3] sm:$0x3] %vm283, %v282
        $region44: #{tpu_custom_call.1} parent=27 // pred_fallthru
          _
        // Predicated region
        $region45: #{tpu_custom_call.1} parent=27 // pred_check
          %p285 = pneg %p264
        $region46: #{tpu_custom_call.1} parent=27 // pred_check_branch
          %287 = sbr.rel (%p285) target = $region48
        $region47: #{tpu_custom_call.1} parent=27 // pred_region
          %s288 = smul.u32 %s27, 128
          %s289 = sshra.s32 %s288, 7
          %s290 = sand.u32 %s288, 127
          %s291 = smul.addr %s289, 4
          %s292 = scalar_lea.vmem [#allocation4], %s291
          %v293 = vld [vmem:[%s292] sm:$0xf]
          %v294 = vld [vmem:[#allocation3] sm:$0x3]
          %v295 = vpack.c.bf16 %v293, %v293
          %vm296 = vcmask 31744
          %v298 = vsel %vm296, %v294, 0
          %vm300 = vcmask 1041408
          %v302 = vsel %vm300, %v295, 0
          %304 = vmatprep.subr.bf16.mxu0 0
          %305 = vmatpush1.bf16.msra.mxu0 %v302
          %306 = vmatprep.subr.bf16.mxu0 0
          %307 = vmatpush1.bf16.msra.mxu0 0
          %308 = vmatprep.subr.bf16.mxu0 0
          %309 = vmatpush1.bf16.msra.mxu0 0
          %310 = vmatprep.subr.bf16.mxu0 0
          %311 = vmatpush1.bf16.msra.mxu0 0
          %312 = vmatprep.subr.bf16.mxu0 0
          %313 = vmatpush1.bf16.msra.mxu0 0
          %314 = vmatprep.subr.bf16.mxu0 0
          %315 = vmatpush1.bf16.msra.mxu0 0
          %316 = vmatprep.subr.bf16.mxu0 0
          %317 = vmatpush1.bf16.msra.mxu0 0
          %318 = vmatprep.subr.bf16.mxu0 0
          %319 = vmatpush1.bf16.msra.mxu0 0
          %320 = vmatprep.subr.bf16.mxu0 0
          %321 = vmatpush1.bf16.msra.mxu0 0
          %322 = vmatprep.subr.bf16.mxu0 0
          %323 = vmatpush1.bf16.msra.mxu0 0
          %324 = vmatprep.subr.bf16.mxu0 0
          %325 = vmatpush1.bf16.msra.mxu0 0
          %326 = vmatprep.subr.bf16.mxu0 0
          %327 = vmatpush1.bf16.msra.mxu0 0
          %328 = vmatprep.subr.bf16.mxu0 0
          %329 = vmatpush1.bf16.msra.mxu0 0
          %330 = vmatprep.subr.bf16.mxu0 0
          %331 = vmatpush1.bf16.msra.mxu0 0
          %332 = vmatprep.subr.bf16.mxu0 0
          %333 = vmatpush1.bf16.msra.mxu0 0
          %334 = vmatprep.subr.bf16.mxu0 0
          %335 = vmatpush1.bf16.msra.mxu0 0
          %336 = vmatprep.mubr.bf16.mxu0 0
          %337 = vmatmul.mubr.bf16.gmra.mrb[0].mxu0 %v298
          %v338 = vpop.f32.mrb[0].mxu0
          %v339 = vadd.f32 0.0, %v338
          %v340 = vpop.f32.mrb[0].mxu0
          %v341 = vpop.f32.mrb[0].mxu0
          %v342 = vpop.f32.mrb[0].mxu0
          %343 = vdwg.mxu0
          %s344 = sld [smem:[#allocation5]]
          %v345 = vstv %s344
          %v346 = vmul.f32 %v339, %v345
          %v347 = vadd.f32 %v346, %v293
          %348 = vst [vmem:[%s195] sm:$0xf] %v347
        $region48: #{tpu_custom_call.1} parent=27 // pred_fallthru
          _
        %s349 = sand.u32 %s106, 1
        %s350 = scalar_lea.sflag [#allocation8], %s349
        %s351 = sand.u32 %s106, 1
        %s352 = smul.addr %s351, 4
        %s353 = scalar_lea.vmem [#allocation9], %s352
        // Predicated region
        $region49: #{tpu_custom_call.1} parent=27 // pred_check
          %p354 = pneg %p116
        $region50: #{tpu_custom_call.1} parent=27 // pred_check_branch
          %356 = sbr.rel (%p354) target = $region52
        $region51: #{tpu_custom_call.1} parent=27 // pred_region
          %s357 = smul.u32 %s26, %s27
          %s359 = ssub.s32 64, 64
          %360 = vsyncadd %s350, %s359
          %s361 = smul.addr %s25, 2
          %s362 = sadd.s32 %s357, %s361
          %s363 = smul.addr %s362, 64
          %s364 = scalar_lea.hbm %s2, %s363
          %s366 = sshll.u32 %s353, 4
          %s367 = int_to_ptr.vmem [resolvable:$true] %s366
          %369 = dma.vmem_to_hbm [thread:$0]  %s367, 64, %s364, %s350
        $region52: #{tpu_custom_call.1} parent=27 // pred_fallthru
          _
      $region28: #{tpu_custom_call.1} parent=5 // pred_fallthru
        _
      %p370 = scmp.le.s32.totalorder 2, %s15
      // Predicated region
      $region53: #{tpu_custom_call.1} parent=5 // pred_check
        %p371 = pneg %p370
      $region54: #{tpu_custom_call.1} parent=5 // pred_check_branch
        %373 = sbr.rel (%p371) target = $region56
      $region55: #{tpu_custom_call.1} parent=5 // pred_region
        %s374 = ssub.s32 %s15, 2
        // Predicated region
        $region57: #{tpu_custom_call.1} parent=55 // pred_check
          %p375 = pneg %p122
        $region58: #{tpu_custom_call.1} parent=55 // pred_check_branch
          %377 = sbr.rel (%p375) target = $region60
        $region59: #{tpu_custom_call.1} parent=55 // pred_region
          %s378 = sand.u32 %s107, 1
          %s379 = scalar_lea.sflag [#allocation8], %s378
          %s380 = sand.u32 %s107, 1
          %s381 = smul.addr %s380, 4
          %s382 = scalar_lea.vmem [#allocation9], %s381
          %383 = dma.done %s379, 64
        $region60: #{tpu_custom_call.1} parent=55 // pred_fallthru
          _
      $region56: #{tpu_custom_call.1} parent=5 // pred_fallthru
        _
    $region6: #{tpu_custom_call.1} parent=1 // loop_footer
      %s19 = sadd.s32 1, %s15
    $region7: #{tpu_custom_call.1} parent=1 // loop_footer_branch
      %14 = sbr.rel target = $region3
    $region8: #{tpu_custom_call.1} parent=1 // loop_exit
      _
    %384 = vsyncpa [#allocation7], 1
    %s385 = scalar_lea.sflag [#allocation7], 1
    %386 = vsyncpa %s385, 1
    %387 = vsyncpa [#allocation8], 1
    %s388 = scalar_lea.sflag [#allocation8], 1
    %389 = vsyncpa %s388, 1

</llo_original>
